<compile_context>
chip_gen: v6e
topology: v6e:2x2x1
jax: 0.10.0
libtpu: 0.0.40
codegen_flags: <defaults>
</compile_context>

<pallas_src>
import functools

import jax
import jax.numpy as jnp
from jax.experimental import pallas as pl
from jax.experimental.pallas import tpu as pltpu


_CHUNK = 512  # rows of x processed per in-kernel compute step


def _round_up(x, m):
    return ((x + m - 1) // m) * m


def _mlp_kernel(x_ref, w1_ref, b1_ref, w2_ref, b2_ref, w3_ref, b3_ref, o_ref,
                *, chunk):
    """One (TB, 57) f32 tile of x -> (TB, 2) f32 log-probs, chunked over rows."""
    tb = x_ref.shape[0]
    n_chunks = tb // chunk               # static -> loop fully unrolled at trace time

    # Weights/biases are tiny and VMEM-resident (constant index maps).
    w1 = w1_ref[...]                     # (57, 64) bf16
    b1 = b1_ref[...]                     # (1, 64)  f32
    w2 = w2_ref[...]                     # (64, 32) f32
    b2 = b2_ref[...]                     # (1, 32)  f32
    w3 = w3_ref[...]                     # (32, 2)  f32
    b3 = b3_ref[...]                     # (1, 2)   f32

    # Chunk the compute so the large DMA tile never materializes (TB, 64)/(TB, 32)
    # f32 temporaries at once; per-chunk footprint stays ~0.5 MiB.
    for c in range(n_chunks):
        r0 = c * chunk                   # static chunk offset
        x = x_ref[pl.ds(r0, chunk), :].astype(jnp.bfloat16)           # (CH, 57)

        # hidden1 + ReLU  (bf16 MXU inputs, f32 accumulation, f32 bias/activation)
        h1 = jnp.dot(x, w1, preferred_element_type=jnp.float32) + b1
        h1 = jnp.maximum(h1, 0.0)                                      # (CH, 64) f32

        # hidden2 + ReLU  (activations never touch HBM -> stay f32, no downcast)
        h2 = jnp.dot(h1, w2, preferred_element_type=jnp.float32) + b2
        h2 = jnp.maximum(h2, 0.0)                                      # (CH, 32) f32

        # classification layer
        logits = jnp.dot(h2, w3, preferred_element_type=jnp.float32) + b3

        # LogSoftmax(dim=1) — lane-free, numerically stable 2-class form
        # (logaddexp handles the max-shift internally; no XLU reductions).
        lse = jnp.logaddexp(logits[:, 0:1], logits[:, 1:2])            # (CH, 1)
        o_ref[pl.ds(r0, chunk), :] = (logits - lse).astype(o_ref.dtype)


def _choose_tiles(batch, block_rows):
    """Pick (row-tile TB, in-kernel chunk CH). TB is a multiple of 8 (and of CH)."""
    rows8 = _round_up(batch, 8)
    if rows8 <= _CHUNK:
        return rows8, rows8                            # single small tile, one chunk
    block_rows = max(_CHUNK, _round_up(block_rows, _CHUNK))
    tb = min(block_rows, _round_up(rows8, _CHUNK))
    # Keep >= 2 grid steps when the batch allows it so the "parallel" batch axis
    # can shard across v7x's two TensorCores.
    if _round_up(rows8, tb) // tb < 2:
        tb = max(_CHUNK, _round_up((rows8 + 1) // 2, _CHUNK))
    return tb, _CHUNK


@functools.partial(jax.jit, static_argnames=("block_rows",))
def mlp_forward(x, params, *, block_rows=8192):
    """x: (B, 57) float32. params: dict of w1,b1,w2,b2,w3,b3 (weights as [in, out])."""
    w1, b1, w2, b2, w3, b3 = (params[k] for k in ("w1", "b1", "w2", "b2", "w3", "b3"))
    B, f_in = x.shape

    # Tiny one-off weight prep (identity if prepare_params() was already applied).
    w1_bf = w1.astype(jnp.bfloat16)

    TB, CH = _choose_tiles(B, block_rows)
    B_pad = _round_up(B, TB)
    if B_pad != B:
        # Row-tail padding only; feature dim and dtype of x are untouched, so the
        # kernel still reads the original f32 rows straight from HBM.
        x = jnp.pad(x, ((0, B_pad - B), (0, 0)))

    grid = (B_pad // TB,)

    flops = 2 * B_pad * (f_in * 64 + 64 * 32 + 32 * 2)
    bytes_accessed = (
        B_pad * f_in * 4 + B_pad * 2 * 4                       # x in (f32) + logits out (f32)
        + w1_bf.size * 2                                       # bf16 w1
        + (w2.size + w3.size + b1.size + b2.size + b3.size) * 4
    )
    # x tile and out tile both lane-pad to 128 in VMEM and are double-buffered.
    vmem_limit = int(min(max(4 * TB * 512 + (8 << 20), 16 << 20), 48 << 20))

    const = lambda i: (0, 0)   # weights/biases: same block every step -> VMEM-resident

    out = pl.pallas_call(
        functools.partial(_mlp_kernel, chunk=CH),
        out_shape=jax.ShapeDtypeStruct((B_pad, 2), jnp.float32),
        grid=grid,
        in_specs=[
            pl.BlockSpec((TB, f_in), lambda i: (i, 0)),        # x tile (f32), pipelined
            pl.BlockSpec((f_in, 64), const),                   # w1 (bf16, resident)
            pl.BlockSpec((1, 64), const),                      # b1
            pl.BlockSpec((64, 32), const),                     # w2
            pl.BlockSpec((1, 32), const),                      # b2
            pl.BlockSpec((32, 2), const),                      # w3
            pl.BlockSpec((1, 2), const),                       # b3
        ],
        out_specs=pl.BlockSpec((TB, 2), lambda i: (i, 0)),
        compiler_params=pltpu.CompilerParams(
            dimension_semantics=("parallel",),                 # shard batch across TCs
            vmem_limit_bytes=vmem_limit,
        ),
        cost_estimate=pl.CostEstimate(
            flops=flops,
            transcendentals=2 * B_pad,                         # exp + log per row
            bytes_accessed=bytes_accessed,
        ),
    )(x, w1_bf, b1, w2, b2, w3, b3)

    return out[:B]


def init_params(key):
    """Deterministic init mimicking nn.Linear's U(-1/sqrt(in), 1/sqrt(in))."""
    ks = jax.random.split(key, 6)

    def linear(kw, kb, fan_in, fan_out):
        bound = 1.0 / jnp.sqrt(fan_in)
        w = jax.random.uniform(kw, (fan_in, fan_out), jnp.float32, -bound, bound)
        b = jax.random.uniform(kb, (1, fan_out), jnp.float32, -bound, bound)
        return w, b

    w1, b1 = linear(ks[0], ks[1], 57, 64)
    w2, b2 = linear(ks[2], ks[3], 64, 32)
    w3, b3 = linear(ks[4], ks[5], 32, 2)
    return dict(w1=w1, b1=b1, w2=w2, b2=b2, w3=w3, b3=b3)


def prepare_params(params):
    """Hoisted one-off weight prep: only w1 (tiny) is cast to bf16 for the MXU."""
    p = dict(params)
    p["w1"] = params["w1"].astype(jnp.bfloat16)
    return p


def mlp_reference_f32(x, p):
    """Full-precision reference matching the original PyTorch module."""
    dot = lambda a, b: jnp.dot(a, b, precision=jax.lax.Precision.HIGHEST)
    h1 = jnp.maximum(dot(x, p["w1"]) + p["b1"], 0.0)
    h2 = jnp.maximum(dot(h1, p["w2"]) + p["b2"], 0.0)
    logits = dot(h2, p["w3"]) + p["b3"]
    return jax.nn.log_softmax(logits, axis=1)


if __name__ == "__main__":
    key = jax.random.PRNGKey(0)
    k_param, k_x1, k_x2 = jax.random.split(key, 3)
    params_f32 = init_params(k_param)
    params = prepare_params(params_f32)

    # Small primary check: batch=8 x 57 Spambase features (single-tile path).
    x_small = jax.random.normal(k_x1, (8, 57), jnp.float32)
    out_small = jax.block_until_ready(mlp_forward(x_small, params))
    assert out_small.shape == (8, 2)
    ref_small = mlp_reference_f32(x_small, params_f32)
    assert jnp.allclose(out_small, ref_small, atol=5e-2, rtol=5e-2), (
        f"max diff (small): {jnp.max(jnp.abs(out_small - ref_small))}")
    # log-softmax rows must exponentiate to probabilities summing to 1.
    assert jnp.allclose(jnp.exp(out_small).sum(axis=1), 1.0, atol=1e-3)

    # Larger check exercising row-tail padding, in-kernel chunking and a
    # multi-step ("parallel") grid.
    x_big = jax.random.normal(k_x2, (2047, 57), jnp.float32)
    out_big = jax.block_until_ready(mlp_forward(x_big, params))
    assert out_big.shape == (2047, 2)
    ref_big = mlp_reference_f32(x_big, params_f32)
    assert jnp.allclose(out_big, ref_big, atol=5e-2, rtol=5e-2), (
        f"max diff (big): {jnp.max(jnp.abs(out_big - ref_big))}")

    print("KERNEL_OK")
</pallas_src>

<mosaic_0001>
module attributes {stable_mosaic.version = 11 : i64} {
  func.func @_mlp_kernel(%arg0: i32, %arg1: memref<8x57xf32, #tpu.memory_space<vmem>>, %arg2: memref<57x64xbf16, #tpu.memory_space<vmem>>, %arg3: memref<1x64xf32, #tpu.memory_space<vmem>>, %arg4: memref<64x32xf32, #tpu.memory_space<vmem>>, %arg5: memref<1x32xf32, #tpu.memory_space<vmem>>, %arg6: memref<32x2xf32, #tpu.memory_space<vmem>>, %arg7: memref<1x2xf32, #tpu.memory_space<vmem>>, %arg8: memref<8x2xf32, #tpu.memory_space<vmem>>) attributes {dimension_semantics = [#tpu.dimension_semantics<parallel>], iteration_bounds = array<i64: 1>, scalar_prefetch = 0 : i64, scratch_operands = 0 : i64, tpu.core_type = #tpu.core_type<tc>, window_params = [{transform_indices = @transform_0, window_bounds = array<i64: 8, 57>}, {pipeline_mode = #tpu.pipeline_mode<synchronous>, transform_indices = @transform_1, window_bounds = array<i64: 57, 64>}, {pipeline_mode = #tpu.pipeline_mode<synchronous>, transform_indices = @transform_2, window_bounds = array<i64: 1, 64>}, {pipeline_mode = #tpu.pipeline_mode<synchronous>, transform_indices = @transform_3, window_bounds = array<i64: 64, 32>}, {pipeline_mode = #tpu.pipeline_mode<synchronous>, transform_indices = @transform_4, window_bounds = array<i64: 1, 32>}, {pipeline_mode = #tpu.pipeline_mode<synchronous>, transform_indices = @transform_5, window_bounds = array<i64: 32, 2>}, {pipeline_mode = #tpu.pipeline_mode<synchronous>, transform_indices = @transform_6, window_bounds = array<i64: 1, 2>}, {transform_indices = @transform_7, window_bounds = array<i64: 8, 2>}]} {
    %c0 = arith.constant 0 : index
    %c0_0 = arith.constant 0 : index
    %0 = vector.load %arg2[%c0, %c0_0] : memref<57x64xbf16, #tpu.memory_space<vmem>>, vector<57x64xbf16>
    %c0_1 = arith.constant 0 : index
    %c0_2 = arith.constant 0 : index
    %1 = vector.load %arg3[%c0_1, %c0_2] : memref<1x64xf32, #tpu.memory_space<vmem>>, vector<1x64xf32>
    %c0_3 = arith.constant 0 : index
    %c0_4 = arith.constant 0 : index
    %2 = vector.load %arg4[%c0_3, %c0_4] : memref<64x32xf32, #tpu.memory_space<vmem>>, vector<64x32xf32>
    %c0_5 = arith.constant 0 : index
    %c0_6 = arith.constant 0 : index
    %3 = vector.load %arg5[%c0_5, %c0_6] : memref<1x32xf32, #tpu.memory_space<vmem>>, vector<1x32xf32>
    %c0_7 = arith.constant 0 : index
    %c0_8 = arith.constant 0 : index
    %4 = vector.load %arg6[%c0_7, %c0_8] : memref<32x2xf32, #tpu.memory_space<vmem>>, vector<32x2xf32>
    %c0_9 = arith.constant 0 : index
    %c0_10 = arith.constant 0 : index
    %5 = vector.load %arg7[%c0_9, %c0_10] : memref<1x2xf32, #tpu.memory_space<vmem>>, vector<1x2xf32>
    %c0_11 = arith.constant 0 : index
    %c0_12 = arith.constant 0 : index
    %6 = vector.load %arg1[%c0_11, %c0_12] : memref<8x57xf32, #tpu.memory_space<vmem>>, vector<8x57xf32>
    %7 = arith.truncf %6 : vector<8x57xf32> to vector<8x57xbf16>
    %cst = arith.constant dense<0.000000e+00> : vector<8x64xf32>
    %8 = tpu.matmul %7, %0, %cst {dimension_numbers = #tpu.dot_dimension_numbers<[1], [0], [0], [1], [0, 0, 1, 1], [], []>} : vector<8x57xbf16>, vector<57x64xbf16>, vector<8x64xf32> -> vector<8x64xf32>
    %9 = vector.broadcast %1 : vector<1x64xf32> to vector<8x64xf32>
    %10 = arith.addf %8, %9 : vector<8x64xf32>
    %cst_13 = arith.constant 0.000000e+00 : f32
    %11 = vector.broadcast %cst_13 : f32 to vector<8x64xf32>
    %12 = arith.maximumf %10, %11 : vector<8x64xf32>
    %cst_14 = arith.constant dense<0.000000e+00> : vector<8x32xf32>
    %13 = tpu.matmul %12, %2, %cst_14 {dimension_numbers = #tpu.dot_dimension_numbers<[1], [0], [0], [1], [0, 0, 1, 1], [], []>} : vector<8x64xf32>, vector<64x32xf32>, vector<8x32xf32> -> vector<8x32xf32>
    %14 = vector.broadcast %3 : vector<1x32xf32> to vector<8x32xf32>
    %15 = arith.addf %13, %14 : vector<8x32xf32>
    %cst_15 = arith.constant 0.000000e+00 : f32
    %16 = vector.broadcast %cst_15 : f32 to vector<8x32xf32>
    %17 = arith.maximumf %15, %16 : vector<8x32xf32>
    %cst_16 = arith.constant dense<0.000000e+00> : vector<8x2xf32>
    %18 = tpu.matmul %17, %4, %cst_16 {dimension_numbers = #tpu.dot_dimension_numbers<[1], [0], [0], [1], [0, 0, 1, 1], [], []>} : vector<8x32xf32>, vector<32x2xf32>, vector<8x2xf32> -> vector<8x2xf32>
    %19 = vector.broadcast %5 : vector<1x2xf32> to vector<8x2xf32>
    %20 = arith.addf %18, %19 : vector<8x2xf32>
    %21 = vector.extract_strided_slice %20 {offsets = [0, 0], sizes = [8, 1], strides = [1, 1]} : vector<8x2xf32> to vector<8x1xf32>
    %22 = vector.extract_strided_slice %20 {offsets = [0, 1], sizes = [8, 1], strides = [1, 1]} : vector<8x2xf32> to vector<8x1xf32>
    %23 = arith.maximumf %21, %22 : vector<8x1xf32>
    %24 = arith.subf %21, %22 : vector<8x1xf32>
    %25 = arith.cmpf one, %24, %24 : vector<8x1xf32>
    %26 = arith.addf %21, %22 : vector<8x1xf32>
    %27 = math.absf %24 : vector<8x1xf32>
    %cst_17 = arith.constant 0.000000e+00 : f32
    %28 = vector.broadcast %cst_17 : f32 to vector<8x1xf32>
    %29 = arith.subf %28, %27 : vector<8x1xf32>
    %30 = math.exp %29 : vector<8x1xf32>
    %31 = math.log1p %30 : vector<8x1xf32>
    %32 = arith.addf %23, %31 : vector<8x1xf32>
    %33 = arith.select %25, %26, %32 : vector<8x1xi1>, vector<8x1xf32>
    %34 = vector.broadcast %33 : vector<8x1xf32> to vector<8x2xf32>
    %35 = arith.subf %20, %34 : vector<8x2xf32>
    %c0_18 = arith.constant 0 : index
    %c0_19 = arith.constant 0 : index
    %36 = vector.load %arg8[%c0_18, %c0_19] : memref<8x2xf32, #tpu.memory_space<vmem>>, vector<8x2xf32>
    tpu.vector_store %arg8[%c0_18, %c0_19], %35 {strides = array<i32>} : memref<8x2xf32, #tpu.memory_space<vmem>>, vector<8x2xf32>,
    return
  }
  func.func @transform_0(%arg0: i32) -> (i32, i32) {
    %c0_i32 = arith.constant 0 : i32
    %c0_i32_0 = arith.constant 0 : i32
    return %arg0, %c0_i32 : i32, i32
  }
  func.func @transform_1(%arg0: i32) -> (i32, i32) {
    %c0_i32 = arith.constant 0 : i32
    %c0_i32_0 = arith.constant 0 : i32
    %c0_i32_1 = arith.constant 0 : i32
    return %c0_i32, %c0_i32_0 : i32, i32
  }
  func.func @transform_2(%arg0: i32) -> (i32, i32) {
    %c0_i32 = arith.constant 0 : i32
    %c0_i32_0 = arith.constant 0 : i32
    %c0_i32_1 = arith.constant 0 : i32
    return %c0_i32, %c0_i32_0 : i32, i32
  }
  func.func @transform_3(%arg0: i32) -> (i32, i32) {
    %c0_i32 = arith.constant 0 : i32
    %c0_i32_0 = arith.constant 0 : i32
    %c0_i32_1 = arith.constant 0 : i32
    return %c0_i32, %c0_i32_0 : i32, i32
  }
  func.func @transform_4(%arg0: i32) -> (i32, i32) {
    %c0_i32 = arith.constant 0 : i32
    %c0_i32_0 = arith.constant 0 : i32
    %c0_i32_1 = arith.constant 0 : i32
    return %c0_i32, %c0_i32_0 : i32, i32
  }
  func.func @transform_5(%arg0: i32) -> (i32, i32) {
    %c0_i32 = arith.constant 0 : i32
    %c0_i32_0 = arith.constant 0 : i32
    %c0_i32_1 = arith.constant 0 : i32
    return %c0_i32, %c0_i32_0 : i32, i32
  }
  func.func @transform_6(%arg0: i32) -> (i32, i32) {
    %c0_i32 = arith.constant 0 : i32
    %c0_i32_0 = arith.constant 0 : i32
    %c0_i32_1 = arith.constant 0 : i32
    return %c0_i32, %c0_i32_0 : i32, i32
  }
  func.func @transform_7(%arg0: i32) -> (i32, i32) {
    %c0_i32 = arith.constant 0 : i32
    %c0_i32_0 = arith.constant 0 : i32
    return %arg0, %c0_i32 : i32, i32
  }
}

</mosaic_0001>

<llo_original>
// kernel: mlp_forward.1
$region0: #{mlp_forward.1}
  #allocation0 [shape = 'u32[]', space=smem, size = 0x4, offset = 0x4, fixed_abs, tag = 'smem constant byte address 0x4 - core index']
  #allocation1 [shape = 'u32[144,128]{1,0:T(1,128)}', space=vmem, size = 0x12000, scoped, tag = 'internal scratch']
  %s0 = inlined_call_operand.vmem [shape: f32[8,57], index: 0, kind: input, shape index: {}]
  %s1 = inlined_call_operand.vmem [shape: bf16[57,64], index: 1, kind: input, shape index: {}]
  %s2 = inlined_call_operand.vmem [shape: f32[1,64], index: 2, kind: input, shape index: {}]
  %s3 = inlined_call_operand.vmem [shape: f32[64,32], index: 3, kind: input, shape index: {}]
  %s4 = inlined_call_operand.vmem [shape: f32[1,32], index: 4, kind: input, shape index: {}]
  %s5 = inlined_call_operand.vmem [shape: f32[32,2], index: 5, kind: input, shape index: {}]
  %s6 = inlined_call_operand.vmem [shape: f32[1,2], index: 6, kind: input, shape index: {}]
  %s7 = inlined_call_operand.vmem [shape: f32[8,2], index: 7, kind: output, shape index: {}]
  %s8 = sld [smem:[#allocation0]]
  $region38: #{mlp_forward.1} parent=0
    _
  %s10 = ssub.s32 1, %s8
  %s11 = scalar_select 0, %s10, %s8
  // Predicated region
  $region2: #{mlp_forward.1} parent=0 // pred_check
    _
  $region3: #{mlp_forward.1} parent=0 // pred_check_branch
    %13 = sbr.rel (0) target = $region5
  $region4: #{mlp_forward.1} parent=0 // pred_region
    _
  $region5: #{mlp_forward.1} parent=0 // pred_fallthru
    _
  // Predicated region
  $region6: #{mlp_forward.1} parent=0 // pred_check
    _
  $region7: #{mlp_forward.1} parent=0 // pred_check_branch
    %15 = sbr.rel (0) target = $region9
  $region8: #{mlp_forward.1} parent=0 // pred_region
    _
  $region9: #{mlp_forward.1} parent=0 // pred_fallthru
    _
  // Predicated region
  $region10: #{mlp_forward.1} parent=0 // pred_check
    _
  $region11: #{mlp_forward.1} parent=0 // pred_check_branch
    %17 = sbr.rel (0) target = $region13
  $region12: #{mlp_forward.1} parent=0 // pred_region
    _
  $region13: #{mlp_forward.1} parent=0 // pred_fallthru
    _
  // Predicated region
  $region14: #{mlp_forward.1} parent=0 // pred_check
    _
  $region15: #{mlp_forward.1} parent=0 // pred_check_branch
    %19 = sbr.rel (0) target = $region17
  $region16: #{mlp_forward.1} parent=0 // pred_region
    _
  $region17: #{mlp_forward.1} parent=0 // pred_fallthru
    _
  // Predicated region
  $region18: #{mlp_forward.1} parent=0 // pred_check
    _
  $region19: #{mlp_forward.1} parent=0 // pred_check_branch
    %21 = sbr.rel (0) target = $region21
  $region20: #{mlp_forward.1} parent=0 // pred_region
    _
  $region21: #{mlp_forward.1} parent=0 // pred_fallthru
    _
  // Predicated region
  $region22: #{mlp_forward.1} parent=0 // pred_check
    _
  $region23: #{mlp_forward.1} parent=0 // pred_check_branch
    %23 = sbr.rel (0) target = $region25
  $region24: #{mlp_forward.1} parent=0 // pred_region
    _
  $region25: #{mlp_forward.1} parent=0 // pred_fallthru
    _
  // Predicated region
  $region26: #{mlp_forward.1} parent=0 // pred_check
    _
  $region27: #{mlp_forward.1} parent=0 // pred_check_branch
    %25 = sbr.rel (0) target = $region29
  $region28: #{mlp_forward.1} parent=0 // pred_region
    _
  $region29: #{mlp_forward.1} parent=0 // pred_fallthru
    _
  %v27 = vld [vmem:[%s1] sm:$0xf]
  %v28 = vld [vmem:[%s1 + $0x4] sm:$0xf]
  %v29 = vld [vmem:[%s1 + $0x8] sm:$0xf]
  %v30 = vld [vmem:[%s1 + $0xc] sm:$0xf]
  %v31 = vld [vmem:[%s1 + $0x10] sm:$0xf]
  %v32 = vld [vmem:[%s1 + $0x14] sm:$0xf]
  %v33 = vld [vmem:[%s1 + $0x18] sm:$0xf]
  %v34 = vld [vmem:[%s1 + $0x1c] sm:$0x1]
  %v35 = vld [vmem:[%s2] sm:$0x1]
  %v36 = vld [vmem:[%s3] sm:$0xff]
  %v37 = vld [vmem:[%s3 + $0x8] sm:$0xff]
  %v38 = vld [vmem:[%s3 + $0x10] sm:$0xff]
  %v39 = vld [vmem:[%s3 + $0x18] sm:$0xff]
  %v40 = vld [vmem:[%s3 + $0x20] sm:$0xff]
  %v41 = vld [vmem:[%s3 + $0x28] sm:$0xff]
  %v42 = vld [vmem:[%s3 + $0x30] sm:$0xff]
  %v43 = vld [vmem:[%s3 + $0x38] sm:$0xff]
  %v44 = vld [vmem:[%s4] sm:$0x1]
  %v45 = vld [vmem:[%s5] sm:$0xff]
  %v46 = vld [vmem:[%s5 + $0x8] sm:$0xff]
  %v47 = vld [vmem:[%s5 + $0x10] sm:$0xff]
  %v48 = vld [vmem:[%s5 + $0x18] sm:$0xff]
  %v49 = vld [vmem:[%s6] sm:$0x1]
  %v50 = vld [vmem:[%s0] sm:$0xff]
  %v51 = vpack.c.bf16 %v50, %v50
  %v53 = vlaneseq
  %v54 = vshrl.u32 %v53, 7
  %v55 = vsub.s32 0, %v54
  %v56 = vrot.slane %v35, %v55
  %v66 = vunpack.c.l.b16 %v27
  %v67 = vunpack.c.l.b16 %v28
  %v68 = vunpack.c.l.b16 %v29
  %v69 = vunpack.c.l.b16 %v30
  %v70 = vunpack.c.l.b16 %v31
  %v71 = vunpack.c.l.b16 %v32
  %v72 = vunpack.c.l.b16 %v33
  %v73 = vunpack.c.l.b16 %v34
  %v74 = vpack.c.b16 %v67, %v66
  %v75 = vpack.c.b16 %v69, %v68
  %v76 = vpack.c.b16 %v71, %v70
  %v77 = vpack.c.b16 %v73, %v72
  %vm81 = vcmask 465920
  %v83 = vsel %vm81, %v51, 0
  %vm85 = vcmask 1043456
  %vm86 = vcmask 1044480
  %v87 = vsel %vm85, 4294967295, 65535
  %v88 = vsel %vm86, %v87, 0
  %v90 = vand.u32 %v77, %v88
  %92 = vmatprep.subr.bf16.mxu0 0
  %93 = vmatpush1.bf16.msra.mxu0 0
  %94 = vmatprep.subr.bf16.mxu0 0
  %95 = vmatpush1.bf16.msra.mxu0 0
  %96 = vmatprep.subr.bf16.mxu0 0
  %97 = vmatpush1.bf16.msra.mxu0 0
  %98 = vmatprep.subr.bf16.mxu0 0
  %99 = vmatpush1.bf16.msra.mxu0 0
  %100 = vmatprep.subr.bf16.mxu0 0
  %101 = vmatpush1.bf16.msra.mxu0 %v90
  %102 = vmatprep.subr.bf16.mxu0 0
  %103 = vmatpush1.bf16.msra.mxu0 %v76
  %104 = vmatprep.subr.bf16.mxu0 0
  %105 = vmatpush1.bf16.msra.mxu0 %v75
  %106 = vmatprep.subr.bf16.mxu0 0
  %107 = vmatpush1.bf16.msra.mxu0 %v74
  %108 = vmatprep.subr.bf16.mxu0 0
  %109 = vmatpush2.bf16.msra.mxu0 0
  %110 = vmatprep.subr.bf16.mxu0 0
  %111 = vmatpush2.bf16.msra.mxu0 0
  %112 = vmatprep.subr.bf16.mxu0 0
  %113 = vmatpush2.bf16.msra.mxu0 0
  %114 = vmatprep.subr.bf16.mxu0 0
  %115 = vmatpush2.bf16.msra.mxu0 0
  %116 = vmatprep.subr.bf16.mxu0 0
  %117 = vmatpush2.bf16.msra.mxu0 0
  %118 = vmatprep.subr.bf16.mxu0 0
  %119 = vmatpush2.bf16.msra.mxu0 0
  %120 = vmatprep.subr.bf16.mxu0 0
  %121 = vmatpush2.bf16.msra.mxu0 0
  %122 = vmatprep.subr.bf16.mxu0 0
  %123 = vmatpush2.bf16.msra.mxu0 0
  %124 = vmatprep.mubr.bf16.mxu0 0
  %125 = vmatmul.mubr.bf16.gmra.mxu0 %v83
  %v126 = vpop.f32.mrf.mxu0
  %v127 = vadd.f32 %v56, %v126
  %v128 = vpop.f32.mrf.mxu0
  %v129 = vpop.f32.mrf.mxu0
  %v130 = vpop.f32.mrf.mxu0
  %131 = vdwg.mxu0
  %v132 = vmax.f32 %v127, 0.0
  %v134 = vlaneseq
  %v135 = vshrl.u32 %v134, 7
  %v136 = vsub.s32 0, %v135
  %v137 = vrot.slane %v44, %v136
  %vm139 = vcmask 523264
  %v141 = vsel %vm139, %v132, 0
  %143 = vmatprep.subr.mxu0 0.0
  %144 = vmatpush1.msra.mxu0 0.0
  %145 = vmatprep.subr.mxu0 0.0
  %146 = vmatpush1.msra.mxu0 0.0
  %147 = vmatprep.subr.mxu0 0.0
  %148 = vmatpush1.msra.mxu0 0.0
  %149 = vmatprep.subr.mxu0 0.0
  %150 = vmatpush1.msra.mxu0 0.0
  %151 = vmatprep.subr.mxu0 0.0
  %152 = vmatpush1.msra.mxu0 0.0
  %153 = vmatprep.subr.mxu0 0.0
  %154 = vmatpush1.msra.mxu0 0.0
  %155 = vmatprep.subr.mxu0 0.0
  %156 = vmatpush1.msra.mxu0 0.0
  %157 = vmatprep.subr.mxu0 0.0
  %158 = vmatpush1.msra.mxu0 0.0
  %159 = vmatprep.subr.mxu0 0.0
  %160 = vmatpush1.msra.mxu0 %v43
  %161 = vmatprep.subr.mxu0 0.0
  %162 = vmatpush1.msra.mxu0 %v42
  %163 = vmatprep.subr.mxu0 0.0
  %164 = vmatpush1.msra.mxu0 %v41
  %165 = vmatprep.subr.mxu0 0.0
  %166 = vmatpush1.msra.mxu0 %v40
  %167 = vmatprep.subr.mxu0 0.0
  %168 = vmatpush1.msra.mxu0 %v39
  %169 = vmatprep.subr.mxu0 0.0
  %170 = vmatpush1.msra.mxu0 %v38
  %171 = vmatprep.subr.mxu0 0.0
  %172 = vmatpush1.msra.mxu0 %v37
  %173 = vmatprep.subr.mxu0 0.0
  %174 = vmatpush1.msra.mxu0 %v36
  %175 = vmatprep.subr.mxu0 0.0
  %176 = vmatpush2.msra.mxu0 0.0
  %177 = vmatprep.subr.mxu0 0.0
  %178 = vmatpush2.msra.mxu0 0.0
  %179 = vmatprep.subr.mxu0 0.0
  %180 = vmatpush2.msra.mxu0 0.0
  %181 = vmatprep.subr.mxu0 0.0
  %182 = vmatpush2.msra.mxu0 0.0
  %183 = vmatprep.subr.mxu0 0.0
  %184 = vmatpush2.msra.mxu0 0.0
  %185 = vmatprep.subr.mxu0 0.0
  %186 = vmatpush2.msra.mxu0 0.0
  %187 = vmatprep.subr.mxu0 0.0
  %188 = vmatpush2.msra.mxu0 0.0
  %189 = vmatprep.subr.mxu0 0.0
  %190 = vmatpush2.msra.mxu0 0.0
  %191 = vmatprep.subr.mxu0 0.0
  %192 = vmatpush2.msra.mxu0 0.0
  %193 = vmatprep.subr.mxu0 0.0
  %194 = vmatpush2.msra.mxu0 0.0
  %195 = vmatprep.subr.mxu0 0.0
  %196 = vmatpush2.msra.mxu0 0.0
  %197 = vmatprep.subr.mxu0 0.0
  %198 = vmatpush2.msra.mxu0 0.0
  %199 = vmatprep.subr.mxu0 0.0
  %200 = vmatpush2.msra.mxu0 0.0
  %201 = vmatprep.subr.mxu0 0.0
  %202 = vmatpush2.msra.mxu0 0.0
  %203 = vmatprep.subr.mxu0 0.0
  %204 = vmatpush2.msra.mxu0 0.0
  %205 = vmatprep.subr.mxu0 0.0
  %206 = vmatpush2.msra.mxu0 0.0
  %207 = vmatprep.mubr.f32.mxu0 0.0
  %208 = vmatmul.mubr.f32.gmra.mxu0 %v141
  %v209 = vpop.f32.mrf.mxu0
  %v210 = vadd.f32 %v137, %v209
  %v211 = vpop.f32.mrf.mxu0
  %212 = vdwg.mxu0
  %v213 = vmax.f32 %v210, 0.0
  %v215 = vlaneseq
  %v216 = vshrl.u32 %v215, 7
  %v217 = vsub.s32 0, %v216
  %v218 = vrot.slane %v49, %v217
  %vm220 = vcmask 261120
  %v222 = vsel %vm220, %v213, 0
  %224 = vmatprep.subr.mxu0 0.0
  %225 = vmatpush1.msra.mxu0 0.0
  %226 = vmatprep.subr.mxu0 0.0
  %227 = vmatpush1.msra.mxu0 0.0
  %228 = vmatprep.subr.mxu0 0.0
  %229 = vmatpush1.msra.mxu0 0.0
  %230 = vmatprep.subr.mxu0 0.0
  %231 = vmatpush1.msra.mxu0 0.0
  %232 = vmatprep.subr.mxu0 0.0
  %233 = vmatpush1.msra.mxu0 0.0
  %234 = vmatprep.subr.mxu0 0.0
  %235 = vmatpush1.msra.mxu0 0.0
  %236 = vmatprep.subr.mxu0 0.0
  %237 = vmatpush1.msra.mxu0 0.0
  %238 = vmatprep.subr.mxu0 0.0
  %239 = vmatpush1.msra.mxu0 0.0
  %240 = vmatprep.subr.mxu0 0.0
  %241 = vmatpush1.msra.mxu0 0.0
  %242 = vmatprep.subr.mxu0 0.0
  %243 = vmatpush1.msra.mxu0 0.0
  %244 = vmatprep.subr.mxu0 0.0
  %245 = vmatpush1.msra.mxu0 0.0
  %246 = vmatprep.subr.mxu0 0.0
  %247 = vmatpush1.msra.mxu0 0.0
  %248 = vmatprep.subr.mxu0 0.0
  %249 = vmatpush1.msra.mxu0 %v48
  %250 = vmatprep.subr.mxu0 0.0
  %251 = vmatpush1.msra.mxu0 %v47
  %252 = vmatprep.subr.mxu0 0.0
  %253 = vmatpush1.msra.mxu0 %v46
  %254 = vmatprep.subr.mxu0 0.0
  %255 = vmatpush1.msra.mxu0 %v45
  %256 = vmatprep.subr.mxu0 0.0
  %257 = vmatpush2.msra.mxu0 0.0
  %258 = vmatprep.subr.mxu0 0.0
  %259 = vmatpush2.msra.mxu0 0.0
  %260 = vmatprep.subr.mxu0 0.0
  %261 = vmatpush2.msra.mxu0 0.0
  %262 = vmatprep.subr.mxu0 0.0
  %263 = vmatpush2.msra.mxu0 0.0
  %264 = vmatprep.subr.mxu0 0.0
  %265 = vmatpush2.msra.mxu0 0.0
  %266 = vmatprep.subr.mxu0 0.0
  %267 = vmatpush2.msra.mxu0 0.0
  %268 = vmatprep.subr.mxu0 0.0
  %269 = vmatpush2.msra.mxu0 0.0
  %270 = vmatprep.subr.mxu0 0.0
  %271 = vmatpush2.msra.mxu0 0.0
  %272 = vmatprep.subr.mxu0 0.0
  %273 = vmatpush2.msra.mxu0 0.0
  %274 = vmatprep.subr.mxu0 0.0
  %275 = vmatpush2.msra.mxu0 0.0
  %276 = vmatprep.subr.mxu0 0.0
  %277 = vmatpush2.msra.mxu0 0.0
  %278 = vmatprep.subr.mxu0 0.0
  %279 = vmatpush2.msra.mxu0 0.0
  %280 = vmatprep.subr.mxu0 0.0
  %281 = vmatpush2.msra.mxu0 0.0
  %282 = vmatprep.subr.mxu0 0.0
  %283 = vmatpush2.msra.mxu0 0.0
  %284 = vmatprep.subr.mxu0 0.0
  %285 = vmatpush2.msra.mxu0 0.0
  %286 = vmatprep.subr.mxu0 0.0
  %287 = vmatpush2.msra.mxu0 0.0
  %288 = vmatprep.mubr.f32.mxu0 0.0
  %289 = vmatmul.mubr.f32.gmra.mxu0 %v222
  %v290 = vpop.f32.mrf.mxu0
  %v291 = vadd.f32 %v218, %v290
  %v292 = vpop.f32.mrf.mxu0
  %293 = vdwg.mxu0
  %295 = vrot.lane.b32.xlu0 %v291, 127
  %v296 = vpop.permute.xlu0 %295
  %v298 = vmax.f32 %v291, %v296
  %v299 = vsub.f32 %v291, %v296
  %vm300 = vcmp.ne.f32.partialorder %v299, %v299
  %v301 = vadd.f32 %v291, %v296
  %v302 = vand.u32 2147483647, %v299
  %v303 = vsub.f32 0.0, %v302
  %v304 = vmul.f32 %v303, 1.442695
  %v305 = vpow.pop %v304
  %v306 = vadd.f32 %v305, 1.0
  %v307 = vlog2.pop %v306
  %v308 = vmul.f32 %v307, 0.6931472
  %v309 = vmul.f32 -0.5, %v305
  %v310 = vadd.f32 %v309, 1.0
  %v311 = vmul.f32 %v310, %v305
  %v312 = vand.u32 2147483647, %v305
  %vm313 = vcmp.lt.f32.partialorder %v312, 0.0004427343
  %v314 = vsel %vm313, %v311, %v308
  %v315 = vadd.f32 %v298, %v314
  %v316 = vsel %vm300, %v301, %v315
  %318 = vset.pattern.permute.xlu0 0
  %319 = vperm.xlu0 %318, %v316
  %v320 = vpop.permute.xlu0 %319
  %v322 = vsub.f32 %v291, %v320
  %vm323 = vcmask 15360
  %324 = vst.msk [vmem:[%s7] sm:$0xff] %vm323, %v322
  // Predicated region
  $region30: #{mlp_forward.1} parent=0 // pred_check
    _
  $region31: #{mlp_forward.1} parent=0 // pred_check_branch
    %326 = sbr.rel (0) target = $region33
  $region32: #{mlp_forward.1} parent=0 // pred_region
    _
  $region33: #{mlp_forward.1} parent=0 // pred_fallthru
    _
  // Predicated region
  $region34: #{mlp_forward.1} parent=0 // pred_check
    _
  $region35: #{mlp_forward.1} parent=0 // pred_check_branch
    %328 = sbr.rel (0) target = $region37
  $region36: #{mlp_forward.1} parent=0 // pred_region
    _
  $region37: #{mlp_forward.1} parent=0 // pred_fallthru
    _

</llo_original>
